<compile_context>
chip_gen: v7x
topology: tpu7x:2x2x1
jax: 0.10.0
libtpu: 0.0.40
codegen_flags: <defaults>
</compile_context>

<pallas_src>
import jax
import jax.numpy as jnp
from jax import lax
from jax.experimental import pallas as pl
from jax.experimental.pallas import tpu as pltpu


def _focal_loss_kernel_factory(gamma: float, n_rows: int, tile_n: int):
    gamma = float(gamma)
    has_tail = (n_rows % tile_n) != 0

    def kernel(x_ref, tgt_ref, alpha_ref, out_ref):
        # Load tile; upcast (supports bf16 logits), compute in f32.
        x = x_ref[...].astype(jnp.float32)            # (TILE_N, C_pad)
        tgt = tgt_ref[...]                            # (TILE_N, 1) int32
        alpha = alpha_ref[...].astype(jnp.float32)    # (1, C_pad)

        if has_tail:
            # Mask rows past the true N (only the last, partial tile has any).
            row = (pl.program_id(0) * tile_n
                   + lax.broadcasted_iota(jnp.int32, (tile_n, 1), 0))
            valid = row < n_rows                      # (TILE_N, 1) bool
            x = jnp.where(valid, x, 0.0)
            tgt = jnp.where(valid, tgt, 0)

        # Stable log-softmax, gathered at the target class only.
        m = jnp.max(x, axis=1, keepdims=True)                       # (TILE_N, 1)
        sum_e = jnp.sum(jnp.exp(x - m), axis=1, keepdims=True)      # (TILE_N, 1)

        col = lax.broadcasted_iota(jnp.int32, x.shape, 1)           # (TILE_N, C_pad)
        mask = col == tgt                                           # boolean one-hot
        x_t = jnp.sum(jnp.where(mask, x, 0.0), axis=1, keepdims=True)
        a_t = jnp.sum(jnp.where(mask, alpha, 0.0), axis=1, keepdims=True)

        log_p = (x_t - m) - jnp.log(sum_e)            # log softmax[target]; no log(0)
        probs = jnp.exp(log_p)

        q = 1.0 - probs
        if gamma == float(int(gamma)) and 0 <= int(gamma) <= 8:
            g = int(gamma)                            # gamma=2 -> single VPU multiply
            if g == 0:
                pw = jnp.ones_like(q)
            else:
                pw = q
                for _ in range(g - 1):
                    pw = pw * q
        else:
            pw = jnp.power(q, gamma)                  # non-integer gamma fallback

        batch_loss = -a_t * pw * log_p                # (TILE_N, 1)
        if has_tail:
            batch_loss = jnp.where(valid, batch_loss, 0.0)

        out_ref[0, 0] = jnp.sum(batch_loss)           # per-tile partial sum (SMEM)

    return kernel


def focal_loss(x, target, num_classes, alpha=None, gamma=2.0, size_average=True,
               tile_n=None, vmem_limit_bytes=32 * 1024 * 1024):
    """Pallas implementation of FocalLoss.forward.

    x:      (N, C) float32/bfloat16 logits
    target: (N,)   int32 class ids
    """
    n, c = x.shape
    assert c == num_classes
    if alpha is None:
        # PyTorch default: torch.Tensor(num_classes, 1).fill_(0.25)
        alpha = jnp.full((num_classes, 1), 0.25, dtype=jnp.float32)
    alpha_row = jnp.asarray(alpha, jnp.float32).reshape(1, num_classes)

    # Lane-dense class axis: pad C to a multiple of 128 lanes.
    c_pad = ((c + 127) // 128) * 128
    if c_pad != c:
        x = jnp.pad(x, ((0, 0), (0, c_pad - c)), constant_values=-1e30)
        alpha_row = jnp.pad(alpha_row, ((0, 0), (0, c_pad - c)))

    tgt = target.reshape(n, 1).astype(jnp.int32)

    # Tile size: >= 512 rows when N allows (amortizes ~0.35us/step), capped so
    # double-buffered inputs (+ lane-padded target) stay well inside the
    # scoped-VMEM budget on every generation (v7x 32/64 MiB, v5e 16->32 MiB).
    itemsize = jnp.dtype(x.dtype).itemsize
    if tile_n is None:
        budget = 8 * 1024 * 1024                       # double-buffered input budget
        per_row = 2 * (c_pad * itemsize + 128 * 4)     # x row + lane-padded tgt row
        tile_n = max(8, min(512, (budget // per_row) // 8 * 8))
    tile_n = min(tile_n, max(8, ((n + 7) // 8) * 8))   # don't exceed (padded) N
    n_tiles = (n + tile_n - 1) // tile_n

    kernel = _focal_loss_kernel_factory(float(gamma), n, tile_n)

    partials = pl.pallas_call(
        kernel,
        grid=(n_tiles,),
        in_specs=[
            pl.BlockSpec((tile_n, c_pad), lambda i: (i, 0)),   # logits tile
            pl.BlockSpec((tile_n, 1), lambda i: (i, 0)),       # target tile
            pl.BlockSpec((1, c_pad), lambda i: (0, 0)),        # alpha (resident)
        ],
        out_specs=pl.BlockSpec((1, 1), lambda i: (i, 0), memory_space=pltpu.SMEM),
        out_shape=jax.ShapeDtypeStruct((n_tiles, 1), jnp.float32),
        compiler_params=pltpu.CompilerParams(
            dimension_semantics=("parallel",),   # independent tiles -> both TCs on v7x
            vmem_limit_bytes=vmem_limit_bytes,
        ),
    )(x, tgt, alpha_row)

    total = jnp.sum(partials)
    return total / n if size_average else total


def _reference_focal_loss(x, target, num_classes, gamma=2.0, size_average=True):
    """Pure-JAX reference mirroring the PyTorch module (default alpha=0.25)."""
    alpha = jnp.full((num_classes,), 0.25, dtype=jnp.float32)
    log_p = jax.nn.log_softmax(x.astype(jnp.float32), axis=1)
    log_pt = jnp.take_along_axis(log_p, target[:, None], axis=1)   # (N, 1)
    pt = jnp.exp(log_pt)
    a = alpha[target][:, None]                                     # (N, 1)
    batch_loss = -a * (1.0 - pt) ** gamma * log_pt
    return jnp.mean(batch_loss) if size_average else jnp.sum(batch_loss)


if __name__ == "__main__":
    key = jax.random.PRNGKey(0)
    k1, k2, k3, k4 = jax.random.split(key, 4)

    # Case 1: small (N, C), single tile, mean reduction, default gamma=2.
    N, C = 8, 16
    x = jax.random.normal(k1, (N, C), dtype=jnp.float32)
    target = jax.random.randint(k2, (N,), 0, C, dtype=jnp.int32)
    loss = jax.block_until_ready(
        focal_loss(x, target, num_classes=C, gamma=2.0, size_average=True))
    ref = _reference_focal_loss(x, target, num_classes=C, gamma=2.0, size_average=True)
    assert jnp.allclose(loss, ref, rtol=1e-5, atol=1e-6), (loss, ref)

    # Case 2: multi-tile grid with a ragged tail (N=20, tile_n=8 -> 3 tiles),
    # sum reduction, integer gamma=3 specialization path.
    N2, C2 = 20, 10
    x2 = jax.random.normal(k3, (N2, C2), dtype=jnp.float32)
    target2 = jax.random.randint(k4, (N2,), 0, C2, dtype=jnp.int32)
    loss2 = jax.block_until_ready(
        focal_loss(x2, target2, num_classes=C2, gamma=3.0, size_average=False, tile_n=8))
    ref2 = _reference_focal_loss(x2, target2, num_classes=C2, gamma=3.0, size_average=False)
    assert jnp.allclose(loss2, ref2, rtol=1e-5, atol=1e-5), (loss2, ref2)

    print("KERNEL_OK")
</pallas_src>

<mosaic_0001>
module attributes {stable_mosaic.version = 11 : i64} {
  func.func @kernel(%arg0: i32, %arg1: memref<8x128xf32, #tpu.memory_space<vmem>>, %arg2: memref<8x1xi32, #tpu.memory_space<vmem>>, %arg3: memref<1x128xf32, #tpu.memory_space<vmem>>, %arg4: memref<1x1xf32, #tpu.memory_space<smem>>) attributes {dimension_semantics = [#tpu.dimension_semantics<parallel>], iteration_bounds = array<i64: 1>, scalar_prefetch = 0 : i64, scratch_operands = 0 : i64, tpu.core_type = #tpu.core_type<tc>, window_params = [{transform_indices = @transform_0, window_bounds = array<i64: 8, 128>}, {transform_indices = @transform_1, window_bounds = array<i64: 8, 1>}, {pipeline_mode = #tpu.pipeline_mode<synchronous>, transform_indices = @transform_2, window_bounds = array<i64: 1, 128>}, {transform_indices = @transform_3, window_bounds = array<i64: 1, 1>}]} {
    %c0 = arith.constant 0 : index
    %c0_0 = arith.constant 0 : index
    %0 = vector.load %arg1[%c0, %c0_0] : memref<8x128xf32, #tpu.memory_space<vmem>>, vector<8x128xf32>
    %c0_1 = arith.constant 0 : index
    %c0_2 = arith.constant 0 : index
    %1 = vector.load %arg2[%c0_1, %c0_2] : memref<8x1xi32, #tpu.memory_space<vmem>>, vector<8x1xi32>
    %c0_3 = arith.constant 0 : index
    %c0_4 = arith.constant 0 : index
    %2 = vector.load %arg3[%c0_3, %c0_4] : memref<1x128xf32, #tpu.memory_space<vmem>>, vector<1x128xf32>
    %cst = arith.constant dense<0xFF800000> : vector<8xf32>
    %3 = vector.multi_reduction <maximumf>, %0, %cst [1] : vector<8x128xf32> to vector<8xf32>
    %4 = vector.shape_cast %3 : vector<8xf32> to vector<8x1xf32>
    %5 = vector.broadcast %4 : vector<8x1xf32> to vector<8x128xf32>
    %6 = arith.subf %0, %5 : vector<8x128xf32>
    %7 = math.exp %6 : vector<8x128xf32>
    %cst_5 = arith.constant dense<0.000000e+00> : vector<8xf32>
    %8 = vector.multi_reduction <add>, %7, %cst_5 [1] : vector<8x128xf32> to vector<8xf32>
    %9 = vector.shape_cast %8 : vector<8xf32> to vector<8x1xf32>
    %10 = tpu.iota {dimensions = array<i32: 1>} : vector<8x128xi32>
    %11 = vector.broadcast %1 : vector<8x1xi32> to vector<8x128xi32>
    %12 = arith.cmpi eq, %10, %11 : vector<8x128xi32>
    %cst_6 = arith.constant 0.000000e+00 : f32
    %13 = vector.broadcast %cst_6 : f32 to vector<8x128xf32>
    %14 = arith.select %12, %0, %13 : vector<8x128xi1>, vector<8x128xf32>
    %cst_7 = arith.constant dense<0.000000e+00> : vector<8xf32>
    %15 = vector.multi_reduction <add>, %14, %cst_7 [1] : vector<8x128xf32> to vector<8xf32>
    %16 = vector.shape_cast %15 : vector<8xf32> to vector<8x1xf32>
    %cst_8 = arith.constant 0.000000e+00 : f32
    %17 = vector.shape_cast %2 : vector<1x128xf32> to vector<1x128xf32>
    %18 = vector.broadcast %17 : vector<1x128xf32> to vector<8x128xf32>
    %19 = vector.broadcast %cst_8 : f32 to vector<8x128xf32>
    %20 = arith.select %12, %18, %19 : vector<8x128xi1>, vector<8x128xf32>
    %cst_9 = arith.constant dense<0.000000e+00> : vector<8xf32>
    %21 = vector.multi_reduction <add>, %20, %cst_9 [1] : vector<8x128xf32> to vector<8xf32>
    %22 = vector.shape_cast %21 : vector<8xf32> to vector<8x1xf32>
    %23 = arith.subf %16, %4 : vector<8x1xf32>
    %24 = math.log %9 : vector<8x1xf32>
    %25 = arith.subf %23, %24 : vector<8x1xf32>
    %26 = math.exp %25 : vector<8x1xf32>
    %cst_10 = arith.constant 1.000000e+00 : f32
    %27 = vector.broadcast %cst_10 : f32 to vector<8x1xf32>
    %28 = arith.subf %27, %26 : vector<8x1xf32>
    %29 = arith.mulf %28, %28 : vector<8x1xf32>
    %cst_11 = arith.constant 0.000000e+00 : f32
    %30 = vector.broadcast %cst_11 : f32 to vector<8x1xf32>
    %31 = arith.subf %30, %22 : vector<8x1xf32>
    %32 = arith.mulf %31, %29 : vector<8x1xf32>
    %33 = arith.mulf %32, %25 : vector<8x1xf32>
    %34 = vector.shape_cast %33 : vector<8x1xf32> to vector<1x8x1xf32>
    %cst_12 = arith.constant dense<0.000000e+00> : vector<1xf32>
    %35 = vector.multi_reduction <add>, %34, %cst_12 [1, 2] : vector<1x8x1xf32> to vector<1xf32>
    %36 = vector.shape_cast %35 : vector<1xf32> to vector<1x1x1xf32>
    %37 = vector.extract %36[0, 0, 0] : f32 from vector<1x1x1xf32>
    %c0_13 = arith.constant 0 : index
    %c0_14 = arith.constant 0 : index
    %38 = memref.load %arg4[%c0_13, %c0_14] : memref<1x1xf32, #tpu.memory_space<smem>>
    memref.store %37, %arg4[%c0_13, %c0_14] : memref<1x1xf32, #tpu.memory_space<smem>>
    return
  }
  func.func @transform_0(%arg0: i32) -> (i32, i32) {
    %c0_i32 = arith.constant 0 : i32
    %c0_i32_0 = arith.constant 0 : i32
    return %arg0, %c0_i32 : i32, i32
  }
  func.func @transform_1(%arg0: i32) -> (i32, i32) {
    %c0_i32 = arith.constant 0 : i32
    %c0_i32_0 = arith.constant 0 : i32
    return %arg0, %c0_i32 : i32, i32
  }
  func.func @transform_2(%arg0: i32) -> (i32, i32) {
    %c0_i32 = arith.constant 0 : i32
    %c0_i32_0 = arith.constant 0 : i32
    %c0_i32_1 = arith.constant 0 : i32
    return %c0_i32, %c0_i32_0 : i32, i32
  }
  func.func @transform_3(%arg0: i32) -> (i32, i32) {
    %c0_i32 = arith.constant 0 : i32
    %c0_i32_0 = arith.constant 0 : i32
    return %arg0, %c0_i32 : i32, i32
  }
}

</mosaic_0001>

<llo_original>
// kernel: tpu_custom_call.1
$region0: #{tpu_custom_call.1}
  #allocation0 [shape = 'u32[]', space=smem, size = 0x4, offset = 0x4, fixed_abs, tag = 'smem constant byte address 0x4 - core index']
  #allocation1 [shape = 'u32[144,128]{1,0:T(1,128)}', space=vmem, size = 0x12000, scoped, tag = 'internal scratch']
  %s0 = inlined_call_operand.vmem [shape: f32[8,128], index: 0, kind: input, shape index: {}]
  %s1 = inlined_call_operand.vmem [shape: s32[8,1], index: 1, kind: input, shape index: {}]
  %s2 = inlined_call_operand.vmem [shape: f32[1,128], index: 2, kind: input, shape index: {}]
  %s3 = inlined_call_operand.hbm [shape: f32[1,1], index: 3, kind: output, shape index: {}]
  %s4 = sld [smem:[#allocation0]]
  $region22: #{tpu_custom_call.1} parent=0
    _
  %s6 = ssub.s32 1, %s4
  %s7 = scalar_select 0, %s6, %s4
  $region1: #{tpu_custom_call.1} parent=0
    #allocation2 [shape = 'u8[512]{0}', space=smem, size = 0x200, scoped, tag = 'output window, operand 0, single buffered']
    #allocation3 [shape = 's32[1]{0}', space=sflag, size = 0x4, scoped, tag = 'scoped memory for tpu_custom_call.1']
    %8 = vsyncpa [#allocation3], 0
    // Predicated region
    $region2: #{tpu_custom_call.1} parent=1 // pred_check
      _
    $region3: #{tpu_custom_call.1} parent=1 // pred_check_branch
      %10 = sbr.rel (0) target = $region5
    $region4: #{tpu_custom_call.1} parent=1 // pred_region
      _
    $region5: #{tpu_custom_call.1} parent=1 // pred_fallthru
      _
    // Predicated region
    $region6: #{tpu_custom_call.1} parent=1 // pred_check
      _
    $region7: #{tpu_custom_call.1} parent=1 // pred_check_branch
      %12 = sbr.rel (0) target = $region9
    $region8: #{tpu_custom_call.1} parent=1 // pred_region
      _
    $region9: #{tpu_custom_call.1} parent=1 // pred_fallthru
      _
    // Predicated region
    $region10: #{tpu_custom_call.1} parent=1 // pred_check
      _
    $region11: #{tpu_custom_call.1} parent=1 // pred_check_branch
      %14 = sbr.rel (0) target = $region13
    $region12: #{tpu_custom_call.1} parent=1 // pred_region
      _
    $region13: #{tpu_custom_call.1} parent=1 // pred_fallthru
      _
    %v15 = vld [vmem:[%s0] sm:$0xff]
    %v16 = vld [vmem:[%s1] sm:$0xff]
    %v17 = vld [vmem:[%s2] sm:$0x1]
    %18 = vmax.xlane.f32.xlu0 %v15
    %v19 = vpop.xlane.xlu0 %18
    %v20 = vsub.f32 %v15, %v19
    %v21 = vmul.f32 %v20, 1.442695
    %v22 = vpow.pop %v21
    %23 = vadd.xlane.f32.xlu0 %v22
    %v24 = vpop.xlane.xlu0 %23
    %v25 = vlaneseq
    %v26 = vand.u32 %v25, 127
    %27 = vset.pattern.permute.xlu0 0
    %28 = vperm.xlu0 %27, %v16
    %v29 = vpop.permute.xlu0 %28
    %vm30 = vcmp.eq.s32.totalorder %v26, %v29
    %v31 = vsel %vm30, %v15, 0.0
    %32 = vadd.xlane.f32.xlu0 %v31
    %v33 = vpop.xlane.xlu0 %32
    %v35 = vlaneseq
    %v36 = vshrl.u32 %v35, 7
    %v37 = vsub.s32 0, %v36
    %v38 = vrot.slane %v17, %v37
    %v40 = vsel %vm30, %v38, 0.0
    %41 = vadd.xlane.f32.xlu0 %v40
    %v42 = vpop.xlane.xlu0 %41
    %v43 = vsub.f32 %v33, %v19
    %v44 = vlog2.pop %v24
    %v45 = vmul.f32 %v44, 0.6931472
    %v46 = vsub.f32 %v43, %v45
    %v47 = vmul.f32 %v46, 1.442695
    %v48 = vpow.pop %v47
    %v49 = vsub.f32 1.0, %v48
    %v50 = vmul.f32 %v49, %v49
    %v51 = vsub.f32 0.0, %v42
    %v52 = vmul.f32 %v51, %v50
    %v53 = vmul.f32 %v52, %v46
    %vm54 = vcmask 7168
    %v55 = vsel %vm54, %v53, 0.0
    %56 = vadd.xlane.f32.xlu0 %v55
    %v57 = vpop.xlane.xlu0 %56
    %v58 = vrot.slane %v57, 4
    %v59 = vadd.f32 %v57, %v58
    %v60 = vrot.slane %v59, 2
    %v61 = vadd.f32 %v59, %v60
    %v62 = vrot.slane %v61, 1
    %v63 = vadd.f32 %v61, %v62
    %s64 = vtos %v63
    %s65 = scalar_lea.smem [#allocation2], 0
    %66 = sst [smem:[%s65]] %s64
    // Predicated region
    $region14: #{tpu_custom_call.1} parent=1 // pred_check
      _
    $region15: #{tpu_custom_call.1} parent=1 // pred_check_branch
      %68 = sbr.rel (0) target = $region17
    $region16: #{tpu_custom_call.1} parent=1 // pred_region
      %s70 = ssub.s32 16, 16
      %71 = vsyncadd [#allocation3], %s70
      %74 = dma.smem_to_hbm [#allocation2], 16, %s3, [#allocation3]
    $region17: #{tpu_custom_call.1} parent=1 // pred_fallthru
      _
    // Predicated region
    $region18: #{tpu_custom_call.1} parent=1 // pred_check
      _
    $region19: #{tpu_custom_call.1} parent=1 // pred_check_branch
      %76 = sbr.rel (0) target = $region21
    $region20: #{tpu_custom_call.1} parent=1 // pred_region
      %77 = dma.done [#allocation3], 16
    $region21: #{tpu_custom_call.1} parent=1 // pred_fallthru
      _
    %78 = sfence
    %79 = vsyncpa [#allocation3], 1

</llo_original>
